<compile_context>
chip_gen: v5e
topology: v5e:2x2
jax: 0.10.0
libtpu: 0.0.40
codegen_flags: <defaults>
</compile_context>

<pallas_src>
import math

import jax
import jax.numpy as jnp
from jax.experimental import pallas as pl
from jax.experimental.pallas import tpu as pltpu


def _discriminator_kernel(gen_ref, raw_ref, env_ref, env_raw_ref,
                          masks_ref, sel_ref, wk_ref, wenv_ref, bias_ref,
                          ctx_ref, env_logit_ref):
    # gen/raw/env/env_raw: [N, n_h] f32 VMEM
    # masks_ref:           [2, N]  f32 VMEM  (row0 = mask1/cnt1, row1 = mask0/cnt0)
    # sel_ref:             [1, N]  f32 VMEM  (1.0 where label == 1)
    # wk_ref, wenv_ref:    [n_h, n_h] f32 VMEM
    # bias_ref:            [2] f32 SMEM      (b_k, b_env)
    # ctx_ref:             [2, N] f32 out    (row0 = pos logits, row1 = neg logits)
    # env_logit_ref:       [N, 1] f32 out
    gen = gen_ref[...]
    raw = raw_ref[...]
    env = env_ref[...]
    env_raw = env_raw_ref[...]
    masks = masks_ref[...]           # [2, N] pre-scaled class-mean weights
    sel = sel_ref[...]               # [1, N]
    wk = wk_ref[...]
    wenv = wenv_ref[...]
    bk = bias_ref[0]
    benv = bias_ref[1]

    # --- context level -------------------------------------------------------
    # 2*f_k(class_mean(gen), g_i) + f_k(class_mean(raw), g_i)
    #   = f_k(class_mean(2*gen + raw), g_i) + 3*b_k      (bilinear is linear in arg 1)
    combo = 2.0 * gen + raw                                              # [N, n_h]
    means = jnp.dot(masks, combo, preferred_element_type=jnp.float32)   # [2, n_h]
    v = jnp.dot(means, wk, preferred_element_type=jnp.float32)          # [2, n_h]
    # scores[c, i] = <v[c], gen[i]>   (lane-dense over nodes, no transpose needed)
    scores = jax.lax.dot_general(v, gen, (((1,), (1,)), ((), ())),
                                 preferred_element_type=jnp.float32)    # [2, N]

    is_pos = sel > 0.5                                                   # [1, N]
    s_a = scores[0:1, :]             # score vs class-1 combo mean
    s_b = scores[1:2, :]             # score vs class-0 combo mean
    bias3 = 3.0 * bk
    logit_pos = jnp.where(is_pos, s_a, s_b) + bias3                      # [1, N]
    logit_neg = jnp.where(is_pos, s_b, s_a) + bias3                      # [1, N]
    ctx_ref[...] = jnp.concatenate([logit_pos, logit_neg], axis=0)       # [2, N]

    # --- patch (local) level -------------------------------------------------
    env_contrast = (2.0 * env + env_raw) * (1.0 / 3.0)                   # [N, n_h]
    ew = jnp.dot(env_contrast, wenv, preferred_element_type=jnp.float32)  # [N, n_h]
    env_logit_ref[...] = jnp.sum(ew * gen, axis=1, keepdims=True) + benv  # [N, 1]


def discriminator_forward(gen_feats, raw_feats, env_feats, env_raw_feats, labels,
                          w_k, b_k, w_env, b_env):
    """Pallas-backed equivalent of Discriminator.forward.

    Returns (context_logits [2N, 1], env_logits [N, 1]).
    """
    N, n_h = gen_feats.shape
    f32 = jnp.float32

    gen = gen_feats.astype(f32)
    raw = raw_feats.astype(f32)
    env = env_feats.astype(f32)
    env_raw = env_raw_feats.astype(f32)

    # Tiny [*, N]-sized wrapper precompute (negligible vs. the feature DMAs):
    # class-membership row + class-mean reciprocals folded into the mask rows.
    mask1 = (labels.reshape(1, N) == 1).astype(f32)                      # [1, N]
    mask0 = 1.0 - mask1
    cnt1 = jnp.sum(mask1)
    cnt0 = jnp.sum(mask0)
    masks = jnp.concatenate([mask1 / cnt1, mask0 / cnt0], axis=0)        # [2, N]
    sel = mask1                                                          # [1, N]

    wk = jnp.asarray(w_k, f32)
    wenv = jnp.asarray(w_env, f32)
    biases = jnp.stack([jnp.asarray(b_k, f32).reshape(()),
                        jnp.asarray(b_env, f32).reshape(())])            # [2] -> SMEM

    grid_spec = pl.GridSpec(
        grid=(1,),
        in_specs=[
            pl.BlockSpec((N, n_h), lambda i: (0, 0)),     # gen
            pl.BlockSpec((N, n_h), lambda i: (0, 0)),     # raw
            pl.BlockSpec((N, n_h), lambda i: (0, 0)),     # env
            pl.BlockSpec((N, n_h), lambda i: (0, 0)),     # env_raw
            pl.BlockSpec((2, N), lambda i: (0, 0)),       # scaled masks
            pl.BlockSpec((1, N), lambda i: (0, 0)),       # selector row
            pl.BlockSpec((n_h, n_h), lambda i: (0, 0)),   # w_k
            pl.BlockSpec((n_h, n_h), lambda i: (0, 0)),   # w_env
            pl.BlockSpec(memory_space=pltpu.MemorySpace.SMEM),  # biases
        ],
        out_specs=(
            pl.BlockSpec((2, N), lambda i: (0, 0)),       # context logits, lane-dense
            pl.BlockSpec((N, 1), lambda i: (0, 0)),       # env logits
        ),
    )

    ctx_rows, env_logits = pl.pallas_call(
        _discriminator_kernel,
        grid_spec=grid_spec,
        out_shape=(jax.ShapeDtypeStruct((2, N), f32),
                   jax.ShapeDtypeStruct((N, 1), f32)),
        compiler_params=pltpu.CompilerParams(
            dimension_semantics=("parallel",)),
    )(gen, raw, env, env_raw, masks, sel, wk, wenv, biases)

    # Row 0 (pos block) then row 1 (neg block), matching torch.cat order.
    context_logits = ctx_rows.reshape(2 * N, 1)
    return context_logits, env_logits


def _reference_forward(gen, raw, env, env_raw, labels, w_k, b_k, w_env, b_env):
    """Pure-JAX reference mirroring the PyTorch module (per-row selected samples)."""
    mask1 = (labels == 1).astype(jnp.float32)[:, None]
    mask0 = 1.0 - mask1
    pos_mean = jnp.sum(gen * mask1, 0, keepdims=True) / jnp.sum(mask1)
    neg_mean = jnp.sum(gen * mask0, 0, keepdims=True) / jnp.sum(mask0)
    rpos_mean = jnp.sum(raw * mask1, 0, keepdims=True) / jnp.sum(mask1)
    rneg_mean = jnp.sum(raw * mask0, 0, keepdims=True) / jnp.sum(mask0)
    pos_s = mask1 * pos_mean + mask0 * neg_mean
    neg_s = mask1 * neg_mean + mask0 * pos_mean
    rpos_s = mask1 * rpos_mean + mask0 * rneg_mean
    rneg_s = mask1 * rneg_mean + mask0 * rpos_mean

    def bil(x1, x2, w, b):
        return jnp.sum((x1 @ w) * x2, -1, keepdims=True) + b

    ctx = jnp.concatenate([
        2.0 * bil(pos_s, gen, w_k, b_k) + bil(rpos_s, gen, w_k, b_k),
        2.0 * bil(neg_s, gen, w_k, b_k) + bil(rneg_s, gen, w_k, b_k),
    ], axis=0)
    env_contrast = (2.0 * env + env_raw) / 3.0
    env_logits = bil(env_contrast, gen, w_env, b_env)
    return ctx, env_logits


if __name__ == "__main__":
    N, n_h = 8, 32  # batch of 8 nodes, hidden size 32; negsamp_round unused in forward

    key = jax.random.PRNGKey(0)
    k1, k2, k3, k4, k5, k6, k7 = jax.random.split(key, 7)

    gen_feats = jax.random.normal(k1, (N, n_h), jnp.float32)
    raw_feats = jax.random.normal(k2, (N, n_h), jnp.float32)
    env_feats = jax.random.normal(k3, (N, n_h), jnp.float32)
    env_raw_feats = jax.random.normal(k4, (N, n_h), jnp.float32)
    labels = (jax.random.uniform(k5, (N,)) > 0.5).astype(jnp.int32)
    labels = labels.at[0].set(1).at[1].set(0)  # ensure both classes are present

    # nn.Bilinear(n_h, n_h, 1): weight [1, n_h, n_h] with xavier_uniform_, bias zeros.
    bound = math.sqrt(6.0 / (n_h * n_h + n_h))
    w_k = jax.random.uniform(k6, (n_h, n_h), jnp.float32, minval=-bound, maxval=bound)
    w_env = jax.random.uniform(k7, (n_h, n_h), jnp.float32, minval=-bound, maxval=bound)
    b_k = jnp.zeros((1,), jnp.float32)
    b_env = jnp.zeros((1,), jnp.float32)

    context_logits, env_logits = discriminator_forward(
        gen_feats, raw_feats, env_feats, env_raw_feats, labels,
        w_k, b_k, w_env, b_env)
    jax.block_until_ready((context_logits, env_logits))

    ref_ctx, ref_env = _reference_forward(
        gen_feats, raw_feats, env_feats, env_raw_feats, labels,
        w_k, b_k[0], w_env, b_env[0])

    assert context_logits.shape == (2 * N, 1)
    assert env_logits.shape == (N, 1)
    assert jnp.allclose(context_logits, ref_ctx, rtol=1e-5, atol=1e-4)
    assert jnp.allclose(env_logits, ref_env, rtol=1e-5, atol=1e-4)

    print("KERNEL_OK")
</pallas_src>

<mosaic_0001>
module attributes {stable_mosaic.version = 11 : i64} {
  func.func @_discriminator_kernel(%arg0: i32, %arg1: memref<8x32xf32, #tpu.memory_space<vmem>>, %arg2: memref<8x32xf32, #tpu.memory_space<vmem>>, %arg3: memref<8x32xf32, #tpu.memory_space<vmem>>, %arg4: memref<8x32xf32, #tpu.memory_space<vmem>>, %arg5: memref<2x8xf32, #tpu.memory_space<vmem>>, %arg6: memref<1x8xf32, #tpu.memory_space<vmem>>, %arg7: memref<32x32xf32, #tpu.memory_space<vmem>>, %arg8: memref<32x32xf32, #tpu.memory_space<vmem>>, %arg9: memref<2xf32, #tpu.memory_space<smem>>, %arg10: memref<2x8xf32, #tpu.memory_space<vmem>>, %arg11: memref<8x1xf32, #tpu.memory_space<vmem>>) attributes {dimension_semantics = [#tpu.dimension_semantics<parallel>], iteration_bounds = array<i64: 1>, scalar_prefetch = 0 : i64, scratch_operands = 0 : i64, tpu.core_type = #tpu.core_type<tc>, window_params = [{pipeline_mode = #tpu.pipeline_mode<synchronous>, transform_indices = @transform_0, window_bounds = array<i64: 8, 32>}, {pipeline_mode = #tpu.pipeline_mode<synchronous>, transform_indices = @transform_1, window_bounds = array<i64: 8, 32>}, {pipeline_mode = #tpu.pipeline_mode<synchronous>, transform_indices = @transform_2, window_bounds = array<i64: 8, 32>}, {pipeline_mode = #tpu.pipeline_mode<synchronous>, transform_indices = @transform_3, window_bounds = array<i64: 8, 32>}, {pipeline_mode = #tpu.pipeline_mode<synchronous>, transform_indices = @transform_4, window_bounds = array<i64: 2, 8>}, {pipeline_mode = #tpu.pipeline_mode<synchronous>, transform_indices = @transform_5, window_bounds = array<i64: 1, 8>}, {pipeline_mode = #tpu.pipeline_mode<synchronous>, transform_indices = @transform_6, window_bounds = array<i64: 32, 32>}, {pipeline_mode = #tpu.pipeline_mode<synchronous>, transform_indices = @transform_7, window_bounds = array<i64: 32, 32>}, {transform_indices = @transform_8, window_bounds = array<i64: 2>}, {pipeline_mode = #tpu.pipeline_mode<synchronous>, transform_indices = @transform_9, window_bounds = array<i64: 2, 8>}, {pipeline_mode = #tpu.pipeline_mode<synchronous>, transform_indices = @transform_10, window_bounds = array<i64: 8, 1>}]} {
    %c0 = arith.constant 0 : index
    %c0_0 = arith.constant 0 : index
    %0 = vector.load %arg1[%c0, %c0_0] : memref<8x32xf32, #tpu.memory_space<vmem>>, vector<8x32xf32>
    %c0_1 = arith.constant 0 : index
    %c0_2 = arith.constant 0 : index
    %1 = vector.load %arg2[%c0_1, %c0_2] : memref<8x32xf32, #tpu.memory_space<vmem>>, vector<8x32xf32>
    %c0_3 = arith.constant 0 : index
    %c0_4 = arith.constant 0 : index
    %2 = vector.load %arg3[%c0_3, %c0_4] : memref<8x32xf32, #tpu.memory_space<vmem>>, vector<8x32xf32>
    %c0_5 = arith.constant 0 : index
    %c0_6 = arith.constant 0 : index
    %3 = vector.load %arg4[%c0_5, %c0_6] : memref<8x32xf32, #tpu.memory_space<vmem>>, vector<8x32xf32>
    %c0_7 = arith.constant 0 : index
    %c0_8 = arith.constant 0 : index
    %4 = vector.load %arg5[%c0_7, %c0_8] : memref<2x8xf32, #tpu.memory_space<vmem>>, vector<2x8xf32>
    %c0_9 = arith.constant 0 : index
    %c0_10 = arith.constant 0 : index
    %5 = vector.load %arg6[%c0_9, %c0_10] : memref<1x8xf32, #tpu.memory_space<vmem>>, vector<1x8xf32>
    %c0_11 = arith.constant 0 : index
    %c0_12 = arith.constant 0 : index
    %6 = vector.load %arg7[%c0_11, %c0_12] : memref<32x32xf32, #tpu.memory_space<vmem>>, vector<32x32xf32>
    %c0_13 = arith.constant 0 : index
    %c0_14 = arith.constant 0 : index
    %7 = vector.load %arg8[%c0_13, %c0_14] : memref<32x32xf32, #tpu.memory_space<vmem>>, vector<32x32xf32>
    %c0_15 = arith.constant 0 : index
    %8 = memref.load %arg9[%c0_15] : memref<2xf32, #tpu.memory_space<smem>>
    %c1 = arith.constant 1 : index
    %9 = memref.load %arg9[%c1] : memref<2xf32, #tpu.memory_space<smem>>
    %cst = arith.constant 2.000000e+00 : f32
    %10 = vector.broadcast %cst : f32 to vector<8x32xf32>
    %11 = arith.mulf %10, %0 : vector<8x32xf32>
    %12 = arith.addf %11, %1 : vector<8x32xf32>
    %cst_16 = arith.constant dense<0.000000e+00> : vector<2x32xf32>
    %13 = tpu.matmul %4, %12, %cst_16 {dimension_numbers = #tpu.dot_dimension_numbers<[1], [0], [0], [1], [0, 0, 1, 1], [], []>} : vector<2x8xf32>, vector<8x32xf32>, vector<2x32xf32> -> vector<2x32xf32>
    %cst_17 = arith.constant dense<0.000000e+00> : vector<2x32xf32>
    %14 = tpu.matmul %13, %6, %cst_17 {dimension_numbers = #tpu.dot_dimension_numbers<[1], [0], [0], [1], [0, 0, 1, 1], [], []>} : vector<2x32xf32>, vector<32x32xf32>, vector<2x32xf32> -> vector<2x32xf32>
    %cst_18 = arith.constant dense<0.000000e+00> : vector<2x8xf32>
    %15 = tpu.matmul %14, %0, %cst_18 {dimension_numbers = #tpu.dot_dimension_numbers<[1], [1], [0], [0], [0, 0, 1, 0], [], []>} : vector<2x32xf32>, vector<8x32xf32>, vector<2x8xf32> -> vector<2x8xf32>
    %cst_19 = arith.constant 5.000000e-01 : f32
    %16 = vector.broadcast %cst_19 : f32 to vector<1x8xf32>
    %17 = arith.cmpf ogt, %5, %16 : vector<1x8xf32>
    %18 = vector.extract_strided_slice %15 {offsets = [0, 0], sizes = [1, 8], strides = [1, 1]} : vector<2x8xf32> to vector<1x8xf32>
    %19 = vector.extract_strided_slice %15 {offsets = [1, 0], sizes = [1, 8], strides = [1, 1]} : vector<2x8xf32> to vector<1x8xf32>
    %cst_20 = arith.constant 3.000000e+00 : f32
    %20 = arith.mulf %cst_20, %8 : f32
    %21 = arith.select %17, %18, %19 : vector<1x8xi1>, vector<1x8xf32>
    %22 = vector.broadcast %20 : f32 to vector<1x8xf32>
    %23 = arith.addf %21, %22 : vector<1x8xf32>
    %24 = arith.select %17, %19, %18 : vector<1x8xi1>, vector<1x8xf32>
    %25 = vector.broadcast %20 : f32 to vector<1x8xf32>
    %26 = arith.addf %24, %25 : vector<1x8xf32>
    %27 = tpu.concatenate %23, %26 in 0 : vector<1x8xf32>, vector<1x8xf32> -> vector<2x8xf32>
    %c0_21 = arith.constant 0 : index
    %c0_22 = arith.constant 0 : index
    %28 = vector.load %arg10[%c0_21, %c0_22] : memref<2x8xf32, #tpu.memory_space<vmem>>, vector<2x8xf32>
    tpu.vector_store %arg10[%c0_21, %c0_22], %27 {strides = array<i32>} : memref<2x8xf32, #tpu.memory_space<vmem>>, vector<2x8xf32>,
    %cst_23 = arith.constant 2.000000e+00 : f32
    %29 = vector.broadcast %cst_23 : f32 to vector<8x32xf32>
    %30 = arith.mulf %29, %2 : vector<8x32xf32>
    %31 = arith.addf %30, %3 : vector<8x32xf32>
    %cst_24 = arith.constant 0.333333343 : f32
    %32 = vector.broadcast %cst_24 : f32 to vector<8x32xf32>
    %33 = arith.mulf %31, %32 : vector<8x32xf32>
    %cst_25 = arith.constant dense<0.000000e+00> : vector<8x32xf32>
    %34 = tpu.matmul %33, %7, %cst_25 {dimension_numbers = #tpu.dot_dimension_numbers<[1], [0], [0], [1], [0, 0, 1, 1], [], []>} : vector<8x32xf32>, vector<32x32xf32>, vector<8x32xf32> -> vector<8x32xf32>
    %35 = arith.mulf %34, %0 : vector<8x32xf32>
    %cst_26 = arith.constant dense<0.000000e+00> : vector<8xf32>
    %36 = vector.multi_reduction <add>, %35, %cst_26 [1] : vector<8x32xf32> to vector<8xf32>
    %37 = vector.shape_cast %36 : vector<8xf32> to vector<8x1xf32>
    %38 = vector.broadcast %9 : f32 to vector<8x1xf32>
    %39 = arith.addf %37, %38 : vector<8x1xf32>
    %c0_27 = arith.constant 0 : index
    %c0_28 = arith.constant 0 : index
    %40 = vector.load %arg11[%c0_27, %c0_28] : memref<8x1xf32, #tpu.memory_space<vmem>>, vector<8x1xf32>
    tpu.vector_store %arg11[%c0_27, %c0_28], %39 {strides = array<i32>} : memref<8x1xf32, #tpu.memory_space<vmem>>, vector<8x1xf32>,
    return
  }
  func.func @transform_0(%arg0: i32) -> (i32, i32) {
    %c0_i32 = arith.constant 0 : i32
    %c0_i32_0 = arith.constant 0 : i32
    %c0_i32_1 = arith.constant 0 : i32
    return %c0_i32, %c0_i32_0 : i32, i32
  }
  func.func @transform_1(%arg0: i32) -> (i32, i32) {
    %c0_i32 = arith.constant 0 : i32
    %c0_i32_0 = arith.constant 0 : i32
    %c0_i32_1 = arith.constant 0 : i32
    return %c0_i32, %c0_i32_0 : i32, i32
  }
  func.func @transform_2(%arg0: i32) -> (i32, i32) {
    %c0_i32 = arith.constant 0 : i32
    %c0_i32_0 = arith.constant 0 : i32
    %c0_i32_1 = arith.constant 0 : i32
    return %c0_i32, %c0_i32_0 : i32, i32
  }
  func.func @transform_3(%arg0: i32) -> (i32, i32) {
    %c0_i32 = arith.constant 0 : i32
    %c0_i32_0 = arith.constant 0 : i32
    %c0_i32_1 = arith.constant 0 : i32
    return %c0_i32, %c0_i32_0 : i32, i32
  }
  func.func @transform_4(%arg0: i32) -> (i32, i32) {
    %c0_i32 = arith.constant 0 : i32
    %c0_i32_0 = arith.constant 0 : i32
    %c0_i32_1 = arith.constant 0 : i32
    return %c0_i32, %c0_i32_0 : i32, i32
  }
  func.func @transform_5(%arg0: i32) -> (i32, i32) {
    %c0_i32 = arith.constant 0 : i32
    %c0_i32_0 = arith.constant 0 : i32
    %c0_i32_1 = arith.constant 0 : i32
    return %c0_i32, %c0_i32_0 : i32, i32
  }
  func.func @transform_6(%arg0: i32) -> (i32, i32) {
    %c0_i32 = arith.constant 0 : i32
    %c0_i32_0 = arith.constant 0 : i32
    %c0_i32_1 = arith.constant 0 : i32
    return %c0_i32, %c0_i32_0 : i32, i32
  }
  func.func @transform_7(%arg0: i32) -> (i32, i32) {
    %c0_i32 = arith.constant 0 : i32
    %c0_i32_0 = arith.constant 0 : i32
    %c0_i32_1 = arith.constant 0 : i32
    return %c0_i32, %c0_i32_0 : i32, i32
  }
  func.func @transform_8(%arg0: i32) -> i32 {
    %c0_i32 = arith.constant 0 : i32
    %c0_i32_0 = arith.constant 0 : i32
    return %c0_i32 : i32
  }
  func.func @transform_9(%arg0: i32) -> (i32, i32) {
    %c0_i32 = arith.constant 0 : i32
    %c0_i32_0 = arith.constant 0 : i32
    %c0_i32_1 = arith.constant 0 : i32
    return %c0_i32, %c0_i32_0 : i32, i32
  }
  func.func @transform_10(%arg0: i32) -> (i32, i32) {
    %c0_i32 = arith.constant 0 : i32
    %c0_i32_0 = arith.constant 0 : i32
    %c0_i32_1 = arith.constant 0 : i32
    return %c0_i32, %c0_i32_0 : i32, i32
  }
}

</mosaic_0001>

<llo_original>
// kernel: tpu_custom_call.1
$region0: #{tpu_custom_call.1}
  #allocation0 [shape = 'u32[]', space=smem, size = 0x4, offset = 0x4, fixed_abs, tag = 'smem constant byte address 0x4 - core index']
  #allocation1 [shape = 'u32[72,128]{1,0:T(1,128)}', space=vmem, size = 0x9000, scoped, tag = 'internal scratch']
  %s0 = inlined_call_operand.hbm [shape: f32[8,32], index: 0, kind: input, shape index: {}]
  %s1 = inlined_call_operand.hbm [shape: f32[8,32], index: 1, kind: input, shape index: {}]
  %s2 = inlined_call_operand.hbm [shape: f32[8,32], index: 2, kind: input, shape index: {}]
  %s3 = inlined_call_operand.hbm [shape: f32[8,32], index: 3, kind: input, shape index: {}]
  %s4 = inlined_call_operand.vmem [shape: f32[2,8], index: 4, kind: input, shape index: {}]
  %s5 = inlined_call_operand.vmem [shape: f32[1,8], index: 5, kind: input, shape index: {}]
  %s6 = inlined_call_operand.hbm [shape: f32[32,32], index: 6, kind: input, shape index: {}]
  %s7 = inlined_call_operand.hbm [shape: f32[32,32], index: 7, kind: input, shape index: {}]
  %s8 = inlined_call_operand.vmem [shape: f32[2], index: 8, kind: input, shape index: {}]
  %s9 = inlined_call_operand.hbm [shape: f32[2,8], index: 9, kind: output, shape index: {0}]
  %s10 = inlined_call_operand.vmem [shape: f32[8,1], index: 10, kind: output, shape index: {1}]
  %11 = xla_tuple %s9, %s10
  %s12 = sld [smem:[#allocation0]]
  $region82: #{tpu_custom_call.1} parent=0
    _
  %s14 = ssub.s32 1, %s12
  %s15 = scalar_select 0, %s14, %s12
  $region1: #{tpu_custom_call.1} parent=0
    #allocation2 [shape = 'u8[4096]{0}', space=vmem, size = 0x1000, scoped, tag = 'input window, operand 0, single buffered']
    #allocation3 [shape = 's32[1]{0}', space=sflag, size = 0x4, scoped, tag = 'scoped memory for tpu_custom_call.1']
    #allocation4 [shape = 's32[1]{0}', space=sflag, size = 0x4, scoped, tag = 'scoped memory for tpu_custom_call.1']
    #allocation5 [shape = 's32[1]{0}', space=sflag, size = 0x4, scoped, tag = 'scoped memory for tpu_custom_call.1']
    #allocation6 [shape = 'u8[4096]{0}', space=vmem, size = 0x1000, scoped, tag = 'input window, operand 1, single buffered']
    #allocation7 [shape = 's32[1]{0}', space=sflag, size = 0x4, scoped, tag = 'scoped memory for tpu_custom_call.1']
    #allocation8 [shape = 'u8[4096]{0}', space=vmem, size = 0x1000, scoped, tag = 'input window, operand 2, single buffered']
    #allocation9 [shape = 'u8[4096]{0}', space=vmem, size = 0x1000, scoped, tag = 'input window, operand 3, single buffered']
    #allocation10 [shape = 's32[1]{0}', space=sflag, size = 0x4, scoped, tag = 'scoped memory for tpu_custom_call.1']
    #allocation11 [shape = 'u8[16384]{0}', space=vmem, size = 0x4000, scoped, tag = 'input window, operand 6, single buffered']
    #allocation12 [shape = 'u8[16384]{0}', space=vmem, size = 0x4000, scoped, tag = 'input window, operand 7, single buffered']
    #allocation13 [shape = 's32[1]{0}', space=sflag, size = 0x4, scoped, tag = 'scoped memory for tpu_custom_call.1']
    #allocation14 [shape = 'u8[512]{0}', space=smem, size = 0x200, scoped, tag = 'input window, operand 8, single buffered']
    #allocation15 [shape = 'u8[1024]{0}', space=vmem, size = 0x400, scoped, tag = 'output window, operand 0, single buffered']
    %16 = vsyncpa [#allocation3], 0
    %17 = vsyncpa [#allocation7], 0
    %18 = vsyncpa [#allocation10], 0
    %19 = vsyncpa [#allocation13], 0
    %20 = vsyncpa [#allocation5], 0
    %21 = vsyncpa [#allocation4], 0
    // Predicated region
    $region2: #{tpu_custom_call.1} parent=1 // pred_check
      _
    $region3: #{tpu_custom_call.1} parent=1 // pred_check_branch
      %23 = sbr.rel (0) target = $region5
    $region4: #{tpu_custom_call.1} parent=1 // pred_region
      %25 = vsyncadd [#allocation3], 0
      %s27 = sshll.u32 %s0, 4
      %s28 = int_to_ptr.hbm [resolvable:$true] %s27
      %s29 = sshll.u32 [#allocation2], 4
      %s30 = int_to_ptr.vmem [resolvable:$true] %s29
      %32 = dma.hbm_to_vmem [thread:$0]  %s28, 128, %s30, [#allocation3]
    $region5: #{tpu_custom_call.1} parent=1 // pred_fallthru
      _
    // Predicated region
    $region6: #{tpu_custom_call.1} parent=1 // pred_check
      _
    $region7: #{tpu_custom_call.1} parent=1 // pred_check_branch
      %34 = sbr.rel (0) target = $region9
    $region8: #{tpu_custom_call.1} parent=1 // pred_region
      %36 = vsyncadd [#allocation7], 0
      %s38 = sshll.u32 %s1, 4
      %s39 = int_to_ptr.hbm [resolvable:$true] %s38
      %s40 = sshll.u32 [#allocation6], 4
      %s41 = int_to_ptr.vmem [resolvable:$true] %s40
      %43 = dma.hbm_to_vmem [thread:$0]  %s39, 128, %s41, [#allocation7]
    $region9: #{tpu_custom_call.1} parent=1 // pred_fallthru
      _
    // Predicated region
    $region10: #{tpu_custom_call.1} parent=1 // pred_check
      _
    $region11: #{tpu_custom_call.1} parent=1 // pred_check_branch
      %45 = sbr.rel (0) target = $region13
    $region12: #{tpu_custom_call.1} parent=1 // pred_region
      %47 = vsyncadd [#allocation7], 0
      %s49 = sshll.u32 %s2, 4
      %s50 = int_to_ptr.hbm [resolvable:$true] %s49
      %s51 = sshll.u32 [#allocation8], 4
      %s52 = int_to_ptr.vmem [resolvable:$true] %s51
      %54 = dma.hbm_to_vmem [thread:$0]  %s50, 128, %s52, [#allocation7]
    $region13: #{tpu_custom_call.1} parent=1 // pred_fallthru
      _
    // Predicated region
    $region14: #{tpu_custom_call.1} parent=1 // pred_check
      _
    $region15: #{tpu_custom_call.1} parent=1 // pred_check_branch
      %56 = sbr.rel (0) target = $region17
    $region16: #{tpu_custom_call.1} parent=1 // pred_region
      %58 = vsyncadd [#allocation10], 0
      %s60 = sshll.u32 %s3, 4
      %s61 = int_to_ptr.hbm [resolvable:$true] %s60
      %s62 = sshll.u32 [#allocation9], 4
      %s63 = int_to_ptr.vmem [resolvable:$true] %s62
      %65 = dma.hbm_to_vmem [thread:$0]  %s61, 128, %s63, [#allocation10]
    $region17: #{tpu_custom_call.1} parent=1 // pred_fallthru
      _
    // Predicated region
    $region18: #{tpu_custom_call.1} parent=1 // pred_check
      _
    $region19: #{tpu_custom_call.1} parent=1 // pred_check_branch
      %67 = sbr.rel (0) target = $region21
    $region20: #{tpu_custom_call.1} parent=1 // pred_region
      _
    $region21: #{tpu_custom_call.1} parent=1 // pred_fallthru
      _
    // Predicated region
    $region22: #{tpu_custom_call.1} parent=1 // pred_check
      _
    $region23: #{tpu_custom_call.1} parent=1 // pred_check_branch
      %69 = sbr.rel (0) target = $region25
    $region24: #{tpu_custom_call.1} parent=1 // pred_region
      _
    $region25: #{tpu_custom_call.1} parent=1 // pred_fallthru
      _
    // Predicated region
    $region26: #{tpu_custom_call.1} parent=1 // pred_check
      _
    $region27: #{tpu_custom_call.1} parent=1 // pred_check_branch
      %71 = sbr.rel (0) target = $region29
    $region28: #{tpu_custom_call.1} parent=1 // pred_region
      %73 = vsyncadd [#allocation10], 0
      %s74 = sshll.u32 %s6, 4
      %s75 = int_to_ptr.hbm [resolvable:$true] %s74
      %s76 = sshll.u32 [#allocation11], 4
      %s77 = int_to_ptr.vmem [resolvable:$true] %s76
      %82 = dma.hbm_to_vmem [thread:$0]  %s75, 512, %s77, [#allocation10], 128, 128, 8
    $region29: #{tpu_custom_call.1} parent=1 // pred_fallthru
      _
    // Predicated region
    $region30: #{tpu_custom_call.1} parent=1 // pred_check
      _
    $region31: #{tpu_custom_call.1} parent=1 // pred_check_branch
      %84 = sbr.rel (0) target = $region33
    $region32: #{tpu_custom_call.1} parent=1 // pred_region
      %86 = vsyncadd [#allocation13], 0
      %s87 = sshll.u32 %s7, 4
      %s88 = int_to_ptr.hbm [resolvable:$true] %s87
      %s89 = sshll.u32 [#allocation12], 4
      %s90 = int_to_ptr.vmem [resolvable:$true] %s89
      %95 = dma.hbm_to_vmem [thread:$0]  %s88, 512, %s90, [#allocation13], 128, 128, 8
    $region33: #{tpu_custom_call.1} parent=1 // pred_fallthru
      _
    // Predicated region
    $region34: #{tpu_custom_call.1} parent=1 // pred_check
      _
    $region35: #{tpu_custom_call.1} parent=1 // pred_check_branch
      %97 = sbr.rel (0) target = $region37
    $region36: #{tpu_custom_call.1} parent=1 // pred_region
      %99 = vsyncadd [#allocation5], 0
      %s101 = sshll.u32 %s8, 4
      %s102 = int_to_ptr.vmem [resolvable:$true] %s101
      %104 = dma.vmem_to_smem %s102, 16, [#allocation14], [#allocation5]
    $region37: #{tpu_custom_call.1} parent=1 // pred_fallthru
      _
    // Predicated region
    $region38: #{tpu_custom_call.1} parent=1 // pred_check
      _
    $region39: #{tpu_custom_call.1} parent=1 // pred_check_branch
      %106 = sbr.rel (0) target = $region41
    $region40: #{tpu_custom_call.1} parent=1 // pred_region
      %108 = dma.done [#allocation3], 128
    $region41: #{tpu_custom_call.1} parent=1 // pred_fallthru
      _
    // Predicated region
    $region42: #{tpu_custom_call.1} parent=1 // pred_check
      _
    $region43: #{tpu_custom_call.1} parent=1 // pred_check_branch
      %110 = sbr.rel (0) target = $region45
    $region44: #{tpu_custom_call.1} parent=1 // pred_region
      %112 = dma.done [#allocation7], 128
    $region45: #{tpu_custom_call.1} parent=1 // pred_fallthru
      _
    // Predicated region
    $region46: #{tpu_custom_call.1} parent=1 // pred_check
      _
    $region47: #{tpu_custom_call.1} parent=1 // pred_check_branch
      %114 = sbr.rel (0) target = $region49
    $region48: #{tpu_custom_call.1} parent=1 // pred_region
      %116 = dma.done [#allocation7], 128
    $region49: #{tpu_custom_call.1} parent=1 // pred_fallthru
      _
    // Predicated region
    $region50: #{tpu_custom_call.1} parent=1 // pred_check
      _
    $region51: #{tpu_custom_call.1} parent=1 // pred_check_branch
      %118 = sbr.rel (0) target = $region53
    $region52: #{tpu_custom_call.1} parent=1 // pred_region
      %120 = dma.done [#allocation10], 128
    $region53: #{tpu_custom_call.1} parent=1 // pred_fallthru
      _
    // Predicated region
    $region54: #{tpu_custom_call.1} parent=1 // pred_check
      _
    $region55: #{tpu_custom_call.1} parent=1 // pred_check_branch
      %122 = sbr.rel (0) target = $region57
    $region56: #{tpu_custom_call.1} parent=1 // pred_region
      %124 = dma.done [#allocation10], 512
    $region57: #{tpu_custom_call.1} parent=1 // pred_fallthru
      _
    // Predicated region
    $region58: #{tpu_custom_call.1} parent=1 // pred_check
      _
    $region59: #{tpu_custom_call.1} parent=1 // pred_check_branch
      %126 = sbr.rel (0) target = $region61
    $region60: #{tpu_custom_call.1} parent=1 // pred_region
      %128 = dma.done [#allocation13], 512
    $region61: #{tpu_custom_call.1} parent=1 // pred_fallthru
      _
    // Predicated region
    $region62: #{tpu_custom_call.1} parent=1 // pred_check
      _
    $region63: #{tpu_custom_call.1} parent=1 // pred_check_branch
      %130 = sbr.rel (0) target = $region65
    $region64: #{tpu_custom_call.1} parent=1 // pred_region
      %132 = dma.done [#allocation5], 16
    $region65: #{tpu_custom_call.1} parent=1 // pred_fallthru
      _
    %133 = sfence
    %v134 = vld [vmem:[#allocation2] sm:$0xff]
    %v135 = vld [vmem:[#allocation6] sm:$0xff]
    %v136 = vld [vmem:[#allocation8] sm:$0xff]
    %v137 = vld [vmem:[#allocation9] sm:$0xff]
    %v138 = vld [vmem:[%s4] sm:$0x3]
    %v139 = vld [vmem:[%s5] sm:$0x1]
    %v140 = vld [vmem:[#allocation11] sm:$0xff]
    %v141 = vld [vmem:[#allocation11 + $0x8] sm:$0xff]
    %v142 = vld [vmem:[#allocation11 + $0x10] sm:$0xff]
    %v143 = vld [vmem:[#allocation11 + $0x18] sm:$0xff]
    %v144 = vld [vmem:[#allocation12] sm:$0xff]
    %v145 = vld [vmem:[#allocation12 + $0x8] sm:$0xff]
    %v146 = vld [vmem:[#allocation12 + $0x10] sm:$0xff]
    %v147 = vld [vmem:[#allocation12 + $0x18] sm:$0xff]
    %s148 = sld [smem:[#allocation14]]
    %s149 = sld [smem:[#allocation14 + $0x1]]
    %v150 = vmul.f32 %v134, 2.0
    %v151 = vadd.f32 %v150, %v135
    %vm152 = vcmask 64512
    %v154 = vsel %vm152, %v138, 0
    %156 = vmatpush.msra.mxu0 0.0
    %157 = vmatpush.msra.mxu0 0.0
    %158 = vmatpush.msra.mxu0 0.0
    %159 = vmatpush.msra.mxu0 0.0
    %160 = vmatpush.msra.mxu0 0.0
    %161 = vmatpush.msra.mxu0 0.0
    %162 = vmatpush.msra.mxu0 0.0
    %163 = vmatpush.msra.mxu0 0.0
    %164 = vmatpush.msra.mxu0 0.0
    %165 = vmatpush.msra.mxu0 0.0
    %166 = vmatpush.msra.mxu0 0.0
    %167 = vmatpush.msra.mxu0 0.0
    %168 = vmatpush.msra.mxu0 0.0
    %169 = vmatpush.msra.mxu0 0.0
    %170 = vmatpush.msra.mxu0 0.0
    %171 = vmatpush.msra.mxu0 %v151
    %172 = vmatmul.f32.gmra.mxu0 %v154
    %v173 = vpop.f32.mrf.mxu0
    %v174 = vadd.f32 0.0, %v173
    %175 = vdwg.mxu0
    %vm176 = vcmask 261120
    %v178 = vsel %vm176, %v174, 0
    %180 = vmatpush.msra.mxu0 0.0
    %181 = vmatpush.msra.mxu0 0.0
    %182 = vmatpush.msra.mxu0 0.0
    %183 = vmatpush.msra.mxu0 0.0
    %184 = vmatpush.msra.mxu0 0.0
    %185 = vmatpush.msra.mxu0 0.0
    %186 = vmatpush.msra.mxu0 0.0
    %187 = vmatpush.msra.mxu0 0.0
    %188 = vmatpush.msra.mxu0 0.0
    %189 = vmatpush.msra.mxu0 0.0
    %190 = vmatpush.msra.mxu0 0.0
    %191 = vmatpush.msra.mxu0 0.0
    %192 = vmatpush.msra.mxu0 %v143
    %193 = vmatpush.msra.mxu0 %v142
    %194 = vmatpush.msra.mxu0 %v141
    %195 = vmatpush.msra.mxu0 %v140
    %196 = vmatmul.f32.gmra.mxu0 %v178
    %v197 = vpop.f32.mrf.mxu0
    %v198 = vadd.f32 0.0, %v197
    %199 = vdwg.mxu0
    %v201 = vsel %vm176, %v198, 0
    %v204 = vsel %vm176, %v134, 0
    %206 = vmatpush.xpose.msra.mxu0 0.0
    %207 = vmatpush.xpose.msra.mxu0 0.0
    %208 = vmatpush.xpose.msra.mxu0 0.0
    %209 = vmatpush.xpose.msra.mxu0 0.0
    %210 = vmatpush.xpose.msra.mxu0 0.0
    %211 = vmatpush.xpose.msra.mxu0 0.0
    %212 = vmatpush.xpose.msra.mxu0 0.0
    %213 = vmatpush.xpose.msra.mxu0 0.0
    %214 = vmatpush.xpose.msra.mxu0 0.0
    %215 = vmatpush.xpose.msra.mxu0 0.0
    %216 = vmatpush.xpose.msra.mxu0 0.0
    %217 = vmatpush.xpose.msra.mxu0 0.0
    %218 = vmatpush.xpose.msra.mxu0 0.0
    %219 = vmatpush.xpose.msra.mxu0 0.0
    %220 = vmatpush.xpose.msra.mxu0 0.0
    %221 = vmatpush.xpose.msra.mxu0 %v204
    %222 = vmatmul.f32.gmra.mxu0 %v201
    %v223 = vpop.f32.mrf.mxu0
    %v224 = vadd.f32 0.0, %v223
    %225 = vdwg.mxu0
    %vm226 = vcmp.gt.f32.partialorder %v139, 0.5
    %s227 = smul.f32 %s148, 3.0
    %229 = vst [vmem:[#allocation1] sm:$0xff] %v224
    %s230 = scalar_lea.vmem [#allocation1], 1
    %v231 = vld [vmem:[%s230] ss:$9 sm:$0xff]
    %v233 = vsel %vm226, %v224, %v231
    %v234 = vstv %s227
    %v235 = vadd.f32 %v233, %v234
    %236 = vst [vmem:[#allocation1] sm:$0xff] %v224
    %s237 = scalar_lea.vmem [#allocation1], 1
    %v238 = vld [vmem:[%s237] ss:$9 sm:$0xff]
    %v240 = vsel %vm226, %v238, %v224
    %v241 = vadd.f32 %v240, %v234
    %v243 = vperm.slane %v241, 0
    %vm245 = vcmask 1040384
    %v246 = vsel %vm245, %v235, %v243
    %vm247 = vcmask 58368
    %248 = vst.msk [vmem:[#allocation15] sm:$0x3] %vm247, %v246
    %v249 = vmul.f32 %v136, 2.0
    %v250 = vadd.f32 %v249, %v137
    %v251 = vmul.f32 %v250, 0.33333334
    %v253 = vsel %vm176, %v251, 0
    %255 = vmatpush.msra.mxu0 0.0
    %256 = vmatpush.msra.mxu0 0.0
    %257 = vmatpush.msra.mxu0 0.0
    %258 = vmatpush.msra.mxu0 0.0
    %259 = vmatpush.msra.mxu0 0.0
    %260 = vmatpush.msra.mxu0 0.0
    %261 = vmatpush.msra.mxu0 0.0
    %262 = vmatpush.msra.mxu0 0.0
    %263 = vmatpush.msra.mxu0 0.0
    %264 = vmatpush.msra.mxu0 0.0
    %265 = vmatpush.msra.mxu0 0.0
    %266 = vmatpush.msra.mxu0 0.0
    %267 = vmatpush.msra.mxu0 %v147
    %268 = vmatpush.msra.mxu0 %v146
    %269 = vmatpush.msra.mxu0 %v145
    %270 = vmatpush.msra.mxu0 %v144
    %271 = vmatmul.f32.gmra.mxu0 %v253
    %v272 = vpop.f32.mrf.mxu0
    %v273 = vadd.f32 0.0, %v272
    %274 = vdwg.mxu0
    %v275 = vmul.f32 %v273, %v134
    %v276 = vsel %vm176, %v275, 0.0
    %277 = vadd.xlane.f32.xlu0 %v276
    %v278 = vpop.xlane.xlu0 %277
    %v279 = vstv %s149
    %v280 = vadd.f32 %v278, %v279
    %vm281 = vcmask 7168
    %282 = vst.msk [vmem:[%s10] sm:$0xff] %vm281, %v280
    // Predicated region
    $region66: #{tpu_custom_call.1} parent=1 // pred_check
      _
    $region67: #{tpu_custom_call.1} parent=1 // pred_check_branch
      %284 = sbr.rel (0) target = $region69
    $region68: #{tpu_custom_call.1} parent=1 // pred_region
      %286 = vsyncadd [#allocation4], 0
      %s288 = sshll.u32 [#allocation15], 4
      %s289 = int_to_ptr.vmem [resolvable:$true] %s288
      %s290 = sshll.u32 %s9, 4
      %s291 = int_to_ptr.hbm [resolvable:$true] %s290
      %293 = dma.vmem_to_hbm [thread:$0]  %s289, 32, %s291, [#allocation4]
    $region69: #{tpu_custom_call.1} parent=1 // pred_fallthru
      _
    // Predicated region
    $region70: #{tpu_custom_call.1} parent=1 // pred_check
      _
    $region71: #{tpu_custom_call.1} parent=1 // pred_check_branch
      %295 = sbr.rel (0) target = $region73
    $region72: #{tpu_custom_call.1} parent=1 // pred_region
      _
    $region73: #{tpu_custom_call.1} parent=1 // pred_fallthru
      _
    // Predicated region
    $region74: #{tpu_custom_call.1} parent=1 // pred_check
      _
    $region75: #{tpu_custom_call.1} parent=1 // pred_check_branch
      %297 = sbr.rel (0) target = $region77
    $region76: #{tpu_custom_call.1} parent=1 // pred_region
      %299 = dma.done [#allocation4], 32
    $region77: #{tpu_custom_call.1} parent=1 // pred_fallthru
      _
    // Predicated region
    $region78: #{tpu_custom_call.1} parent=1 // pred_check
      _
    $region79: #{tpu_custom_call.1} parent=1 // pred_check_branch
      %301 = sbr.rel (0) target = $region81
    $region80: #{tpu_custom_call.1} parent=1 // pred_region
      _
    $region81: #{tpu_custom_call.1} parent=1 // pred_fallthru
      _
    %302 = vsyncpa [#allocation3], 1
    %303 = vsyncpa [#allocation7], 1
    %304 = vsyncpa [#allocation10], 1
    %305 = vsyncpa [#allocation13], 1
    %306 = vsyncpa [#allocation4], 1
    %307 = vsyncpa [#allocation5], 1

</llo_original>
